<compile_context>
chip_gen: v6e
topology: v6e:2x2x1
jax: 0.10.0
libtpu: 0.0.40
codegen_flags: <defaults>
</compile_context>

<pallas_src>
import functools

import jax
import jax.numpy as jnp
from jax.experimental import pallas as pl
from jax.experimental.pallas import tpu as pltpu

LANE = 128
_VMEM_DECISION_BUDGET = 24 * 1024 * 1024   # tiling decisions stay under this
_VMEM_LIMIT_BYTES = 32 * 1024 * 1024       # explicit scoped limit (safe on v5e/v6e/v7x)


def _round_up(x: int, m: int) -> int:
    return (x + m - 1) // m * m


def _pick_tk(d_pad: int, cap: int, tm: int, h_pad: int, itemsize: int, avail: int) -> int:
    """Largest multiple of 128 that divides d_pad, <= cap, and fits `avail` bytes."""
    n_blk = d_pad // LANE
    best = 1
    for cand in range(1, n_blk + 1):
        tk = cand * LANE
        if tk > cap:
            break
        if 2 * (tm + h_pad) * tk * itemsize > avail:
            break
        if n_blk % cand == 0:
            best = cand
    return best * LANE


# ---------------------------------------------------------------------------
# Kernels
# ---------------------------------------------------------------------------
def _twolayer_single_kernel(x_ref, w1_ref, b1_ref, w2_ref, b2_ref, o_ref, *, approx):
    """Grid = (M_tiles,). Whole reduction dim in one MXU pass; no scratch/gating.

    x_ref:  (TM, Dpad)   w1_ref: (Dpad, Hpad)   b1_ref: (1, Hpad)
    w2_ref: (Hpad, Cpad) b2_ref: (1, Cpad)      o_ref:  (TM, Cpad)
    """
    h = jnp.dot(x_ref[...], w1_ref[...], preferred_element_type=jnp.float32)
    h = h + b1_ref[...]
    # sigmoid: exp on the EUP; reciprocal on the EUP too when approx=True.
    s = pl.reciprocal(1.0 + jnp.exp(-h), approx=approx)
    out = jnp.dot(s.astype(w2_ref.dtype), w2_ref[...], preferred_element_type=jnp.float32)
    o_ref[...] = (out + b2_ref[...]).astype(o_ref.dtype)


def _twolayer_tiled_kernel(x_ref, w1_ref, b1_ref, w2_ref, b2_ref, o_ref, acc_ref,
                           *, tk, w1_resident, approx):
    """Grid = (M_tiles, K_tiles); K (reduction over flattened input dim) is last.

    If w1_resident, w1_ref is the full (Dpad, Hpad) weight (DMA'd once, VMEM
    resident) and is sliced per K step; otherwise it is a streamed (tk, Hpad) slab.
    """
    k = pl.program_id(1)

    @pl.when(k == 0)
    def _init():
        acc_ref[...] = jnp.zeros_like(acc_ref)

    if w1_resident:
        start = pl.multiple_of(k * tk, LANE)
        w1_blk = w1_ref[pl.ds(start, tk), :]
    else:
        w1_blk = w1_ref[...]

    acc_ref[...] += jnp.dot(x_ref[...], w1_blk, preferred_element_type=jnp.float32)

    @pl.when(k == pl.num_programs(1) - 1)
    def _finalize():
        h = acc_ref[...] + b1_ref[...]
        s = pl.reciprocal(1.0 + jnp.exp(-h), approx=approx)
        out = jnp.dot(s.astype(w2_ref.dtype), w2_ref[...],
                      preferred_element_type=jnp.float32)
        o_ref[...] = (out + b2_ref[...]).astype(o_ref.dtype)


# ---------------------------------------------------------------------------
# Wrapper
# ---------------------------------------------------------------------------
def prepare_twolayer_params(w1, b1, w2, b2, *, compute_dtype=jnp.bfloat16):
    """Pad/cast the (static) weights once, outside the per-call path.

    w1: (D, H), b1: (H,), w2: (H, C), b2: (C,)  -- (in, out) layout (= PyTorch W.T).
    Padding is mathematically identity: padded x columns / w1 rows contribute 0
    to fc1; padded hidden lanes give sigmoid(0)=0.5 but hit zeroed w2 rows -> 0;
    padded output lanes are sliced off in the wrapper.
    """
    d, hdim = w1.shape
    cdim = w2.shape[1]
    cdt = jnp.dtype(compute_dtype)
    f32 = jnp.float32

    d_pad = _round_up(d, LANE)
    h_pad = _round_up(hdim, LANE)
    c_pad = _round_up(cdim, LANE)

    w1_p = jnp.zeros((d_pad, h_pad), cdt).at[:d, :hdim].set(w1.astype(cdt))
    b1_p = jnp.zeros((1, h_pad), f32).at[0, :hdim].set(b1.astype(f32))
    w2_p = jnp.zeros((h_pad, c_pad), f32).at[:hdim, :cdim].set(w2.astype(f32))
    b2_p = jnp.zeros((1, c_pad), f32).at[0, :cdim].set(b2.astype(f32))

    return dict(w1=w1_p, b1=b1_p, w2=w2_p, b2=b2_p,
                d=d, hdim=hdim, cdim=cdim,
                d_pad=d_pad, h_pad=h_pad, c_pad=c_pad,
                compute_dtype=cdt)


def twolayer_forward(x, params):
    """x: (N, ...) -> flattened to (N, D).  Returns (N, num_classes) f32."""
    cdt = params["compute_dtype"]
    it = cdt.itemsize
    f32 = jnp.float32

    n = x.shape[0]
    x_flat = x.reshape(n, -1)
    d = x_flat.shape[1]
    assert d == params["d"], (d, params["d"])
    d_pad, h_pad, c_pad = params["d_pad"], params["h_pad"], params["c_pad"]

    # Minimum sublane tile: 8 for 4-byte, 16 for 2-byte, 32 for 1-byte dtypes.
    sublane = 8 if it >= 4 else (16 if it == 2 else 32)
    if n >= 512:
        tm = 256          # fills the 256-wide v6e/v7x MXU; >=2 tiles for megacore
    elif n >= 128:
        tm = 128
    else:
        tm = _round_up(n, sublane)   # tiny batch: single tile, single grid step
    n_pad = _round_up(n, tm)

    # Pad x only when actually required (D is padded to 128 lanes, never to tk).
    x_c = x_flat.astype(cdt)
    if (n_pad != n) or (d_pad != d):
        x_c = jnp.pad(x_c, ((0, n_pad - n), (0, d_pad - d)))

    approx = it < 4  # approx reciprocal error << bf16 input quantization

    # VMEM budgeting (double-buffered tiles; w2/biases/output always resident).
    fixed = 2 * h_pad * c_pad * 4 + 2 * tm * c_pad * 4 + 2 * (h_pad + c_pad) * 4
    single_need = fixed + 2 * tm * d_pad * it + 2 * d_pad * h_pad * it
    tk_cap = 4096 if it == 2 else 2048

    if d_pad <= tk_cap and single_need <= _VMEM_DECISION_BUDGET:
        # ---- Path A: K axis collapsed to a single step ----
        grid = (n_pad // tm,)
        kernel = functools.partial(_twolayer_single_kernel, approx=approx)
        in_specs = [
            pl.BlockSpec((tm, d_pad), lambda i: (i, 0)),        # x batch tile
            pl.BlockSpec((d_pad, h_pad), lambda i: (0, 0)),     # w1: resident
            pl.BlockSpec((1, h_pad), lambda i: (0, 0)),
            pl.BlockSpec((h_pad, c_pad), lambda i: (0, 0)),
            pl.BlockSpec((1, c_pad), lambda i: (0, 0)),
        ]
        out_spec = pl.BlockSpec((tm, c_pad), lambda i: (i, 0))
        scratch = []
        dim_sem = ("parallel",)
        w1_bytes = d_pad * h_pad * it
    else:
        # ---- Path B: K-tiled reduction with f32 accumulator ----
        tk = _pick_tk(d_pad, tk_cap, tm, h_pad, it,
                      _VMEM_DECISION_BUDGET - fixed)
        w1_resident = (fixed + d_pad * h_pad * it + 2 * tm * tk * it
                       + tm * h_pad * 4) <= _VMEM_DECISION_BUDGET
        grid = (n_pad // tm, d_pad // tk)
        kernel = functools.partial(_twolayer_tiled_kernel, tk=tk,
                                   w1_resident=w1_resident, approx=approx)
        if w1_resident:
            # Full w1 DMA'd once (constant index_map), sliced per K step in-kernel.
            w1_spec = pl.BlockSpec((d_pad, h_pad), lambda i, k: (0, 0))
            w1_bytes = d_pad * h_pad * it
        else:
            # Fallback: stream K-slabs (re-read per batch tile).
            w1_spec = pl.BlockSpec((tk, h_pad), lambda i, k: (k, 0))
            w1_bytes = d_pad * h_pad * it * (n_pad // tm)
        in_specs = [
            pl.BlockSpec((tm, tk), lambda i, k: (i, k)),
            w1_spec,
            pl.BlockSpec((1, h_pad), lambda i, k: (0, 0)),
            pl.BlockSpec((h_pad, c_pad), lambda i, k: (0, 0)),
            pl.BlockSpec((1, c_pad), lambda i, k: (0, 0)),
        ]
        out_spec = pl.BlockSpec((tm, c_pad), lambda i, k: (i, 0))
        scratch = [pltpu.VMEM((tm, h_pad), jnp.float32)]
        dim_sem = ("parallel", "arbitrary")

    cost = pl.CostEstimate(
        flops=int(2 * n_pad * d_pad * h_pad + 2 * n_pad * h_pad * c_pad),
        transcendentals=int(n_pad * h_pad),
        bytes_accessed=int(n_pad * d_pad * it + w1_bytes + h_pad * c_pad * 4
                           + n_pad * c_pad * 4 + (h_pad + c_pad) * 4),
    )

    out_pad = pl.pallas_call(
        kernel,
        out_shape=jax.ShapeDtypeStruct((n_pad, c_pad), f32),
        grid_spec=pltpu.PrefetchScalarGridSpec(
            num_scalar_prefetch=0,
            grid=grid,
            in_specs=in_specs,
            out_specs=out_spec,
            scratch_shapes=scratch,
        ),
        compiler_params=pltpu.CompilerParams(
            dimension_semantics=dim_sem,
            vmem_limit_bytes=_VMEM_LIMIT_BYTES,
        ),
        cost_estimate=cost,
    )(x_c, params["w1"], params["b1"], params["w2"], params["b2"])

    # Strip padding: back to (N, num_classes).
    return out_pad[:n, :params["cdim"]]


def reference_forward(x, w1, b1, w2, b2):
    n = x.shape[0]
    xf = x.reshape(n, -1).astype(jnp.float32)
    h = jax.nn.sigmoid(xf @ w1 + b1)
    return h @ w2 + b2


if __name__ == "__main__":
    # Shapes consistent with the module's forward:
    # x: (batch=2, channels=4, spatial=16x16) -> input_dim = 4*16*16 = 1024
    batch, c, s = 2, 4, 16
    input_dim = c * s * s
    hidden_size = 32
    num_classes = 10

    key = jax.random.PRNGKey(0)
    kx, kw1, kb1, kw2, kb2 = jax.random.split(key, 5)

    x = jax.random.normal(kx, (batch, c, s, s), dtype=jnp.float32)

    # PyTorch Linear stores (out, in); we keep (in, out) == W.T.
    w1 = jax.random.normal(kw1, (input_dim, hidden_size), dtype=jnp.float32) * 0.02
    b1 = jax.random.normal(kb1, (hidden_size,), dtype=jnp.float32) * 0.02
    w2 = jax.random.normal(kw2, (hidden_size, num_classes), dtype=jnp.float32) * 0.02
    b2 = jax.random.normal(kb2, (num_classes,), dtype=jnp.float32) * 0.02

    ref = reference_forward(x, w1, b1, w2, b2)

    # Default perf configuration: bf16 MXU inputs, f32 accumulation.
    params_bf16 = prepare_twolayer_params(w1, b1, w2, b2, compute_dtype=jnp.bfloat16)
    fwd_bf16 = jax.jit(lambda xx: twolayer_forward(xx, params_bf16))
    out_bf16 = jax.block_until_ready(fwd_bf16(x))
    assert out_bf16.shape == (batch, num_classes), out_bf16.shape
    assert jnp.allclose(out_bf16, ref, atol=2e-3, rtol=2e-2), "bf16 mismatch vs reference"

    # Strict f32 path for the 1e-5 correctness check.
    params_f32 = prepare_twolayer_params(w1, b1, w2, b2, compute_dtype=jnp.float32)
    fwd_f32 = jax.jit(lambda xx: twolayer_forward(xx, params_f32))
    out_f32 = jax.block_until_ready(fwd_f32(x))
    assert out_f32.shape == (batch, num_classes), out_f32.shape
    assert jnp.allclose(out_f32, ref, atol=1e-5, rtol=1e-5), "f32 mismatch vs reference"

    print("KERNEL_OK")
</pallas_src>

<mosaic_0001>
module attributes {stable_mosaic.version = 11 : i64} {
  func.func @_twolayer_single_kernel(%arg0: i32, %arg1: memref<16x1024xbf16, #tpu.memory_space<vmem>>, %arg2: memref<1024x128xbf16, #tpu.memory_space<vmem>>, %arg3: memref<1x128xf32, #tpu.memory_space<vmem>>, %arg4: memref<128x128xf32, #tpu.memory_space<vmem>>, %arg5: memref<1x128xf32, #tpu.memory_space<vmem>>, %arg6: memref<16x128xf32, #tpu.memory_space<vmem>>) attributes {dimension_semantics = [#tpu.dimension_semantics<parallel>], iteration_bounds = array<i64: 1>, scalar_prefetch = 0 : i64, scratch_operands = 0 : i64, tpu.core_type = #tpu.core_type<tc>, window_params = [{transform_indices = @transform_0, window_bounds = array<i64: 16, 1024>}, {pipeline_mode = #tpu.pipeline_mode<synchronous>, transform_indices = @transform_1, window_bounds = array<i64: 1024, 128>}, {pipeline_mode = #tpu.pipeline_mode<synchronous>, transform_indices = @transform_2, window_bounds = array<i64: 1, 128>}, {pipeline_mode = #tpu.pipeline_mode<synchronous>, transform_indices = @transform_3, window_bounds = array<i64: 128, 128>}, {pipeline_mode = #tpu.pipeline_mode<synchronous>, transform_indices = @transform_4, window_bounds = array<i64: 1, 128>}, {transform_indices = @transform_5, window_bounds = array<i64: 16, 128>}]} {
    %c0 = arith.constant 0 : index
    %c0_0 = arith.constant 0 : index
    %0 = vector.load %arg1[%c0, %c0_0] : memref<16x1024xbf16, #tpu.memory_space<vmem>>, vector<16x1024xbf16>
    %c0_1 = arith.constant 0 : index
    %c0_2 = arith.constant 0 : index
    %1 = vector.load %arg2[%c0_1, %c0_2] : memref<1024x128xbf16, #tpu.memory_space<vmem>>, vector<1024x128xbf16>
    %cst = arith.constant dense<0.000000e+00> : vector<16x128xf32>
    %2 = tpu.matmul %0, %1, %cst {dimension_numbers = #tpu.dot_dimension_numbers<[1], [0], [0], [1], [0, 0, 1, 1], [], []>} : vector<16x1024xbf16>, vector<1024x128xbf16>, vector<16x128xf32> -> vector<16x128xf32>
    %c0_3 = arith.constant 0 : index
    %c0_4 = arith.constant 0 : index
    %3 = vector.load %arg3[%c0_3, %c0_4] : memref<1x128xf32, #tpu.memory_space<vmem>>, vector<1x128xf32>
    %4 = vector.broadcast %3 : vector<1x128xf32> to vector<16x128xf32>
    %5 = arith.addf %2, %4 : vector<16x128xf32>
    %cst_5 = arith.constant 0.000000e+00 : f32
    %6 = vector.broadcast %cst_5 : f32 to vector<16x128xf32>
    %7 = arith.subf %6, %5 : vector<16x128xf32>
    %8 = math.exp %7 : vector<16x128xf32>
    %cst_6 = arith.constant 1.000000e+00 : f32
    %9 = vector.broadcast %cst_6 : f32 to vector<16x128xf32>
    %10 = arith.addf %9, %8 : vector<16x128xf32>
    %11 = tpu.reciprocal %10 {approx = true} : vector<16x128xf32> -> vector<16x128xf32>
    %c0_7 = arith.constant 0 : index
    %c0_8 = arith.constant 0 : index
    %12 = vector.load %arg4[%c0_7, %c0_8] : memref<128x128xf32, #tpu.memory_space<vmem>>, vector<128x128xf32>
    %cst_9 = arith.constant dense<0.000000e+00> : vector<16x128xf32>
    %13 = tpu.matmul %11, %12, %cst_9 {dimension_numbers = #tpu.dot_dimension_numbers<[1], [0], [0], [1], [0, 0, 1, 1], [], []>} : vector<16x128xf32>, vector<128x128xf32>, vector<16x128xf32> -> vector<16x128xf32>
    %c0_10 = arith.constant 0 : index
    %c0_11 = arith.constant 0 : index
    %14 = vector.load %arg5[%c0_10, %c0_11] : memref<1x128xf32, #tpu.memory_space<vmem>>, vector<1x128xf32>
    %15 = vector.broadcast %14 : vector<1x128xf32> to vector<16x128xf32>
    %16 = arith.addf %13, %15 : vector<16x128xf32>
    %c0_12 = arith.constant 0 : index
    %c0_13 = arith.constant 0 : index
    %17 = vector.load %arg6[%c0_12, %c0_13] : memref<16x128xf32, #tpu.memory_space<vmem>>, vector<16x128xf32>
    tpu.vector_store %arg6[%c0_12, %c0_13], %16 {strides = array<i32>} : memref<16x128xf32, #tpu.memory_space<vmem>>, vector<16x128xf32>,
    return
  }
  func.func @transform_0(%arg0: i32) -> (i32, i32) {
    %c0_i32 = arith.constant 0 : i32
    %c0_i32_0 = arith.constant 0 : i32
    return %arg0, %c0_i32 : i32, i32
  }
  func.func @transform_1(%arg0: i32) -> (i32, i32) {
    %c0_i32 = arith.constant 0 : i32
    %c0_i32_0 = arith.constant 0 : i32
    %c0_i32_1 = arith.constant 0 : i32
    return %c0_i32, %c0_i32_0 : i32, i32
  }
  func.func @transform_2(%arg0: i32) -> (i32, i32) {
    %c0_i32 = arith.constant 0 : i32
    %c0_i32_0 = arith.constant 0 : i32
    %c0_i32_1 = arith.constant 0 : i32
    return %c0_i32, %c0_i32_0 : i32, i32
  }
  func.func @transform_3(%arg0: i32) -> (i32, i32) {
    %c0_i32 = arith.constant 0 : i32
    %c0_i32_0 = arith.constant 0 : i32
    %c0_i32_1 = arith.constant 0 : i32
    return %c0_i32, %c0_i32_0 : i32, i32
  }
  func.func @transform_4(%arg0: i32) -> (i32, i32) {
    %c0_i32 = arith.constant 0 : i32
    %c0_i32_0 = arith.constant 0 : i32
    %c0_i32_1 = arith.constant 0 : i32
    return %c0_i32, %c0_i32_0 : i32, i32
  }
  func.func @transform_5(%arg0: i32) -> (i32, i32) {
    %c0_i32 = arith.constant 0 : i32
    %c0_i32_0 = arith.constant 0 : i32
    return %arg0, %c0_i32 : i32, i32
  }
}

</mosaic_0001>

<llo_original>
// kernel: _lambda_.1
$region0: #{_lambda_.1}
  #allocation0 [shape = 'u32[]', space=smem, size = 0x4, offset = 0x4, fixed_abs, tag = 'smem constant byte address 0x4 - core index']
  #allocation1 [shape = 'u32[144,128]{1,0:T(1,128)}', space=vmem, size = 0x12000, scoped, tag = 'internal scratch']
  %s0 = inlined_call_operand.vmem [shape: bf16[16,1024], index: 0, kind: input, shape index: {}]
  %s1 = inlined_call_operand.hbm [shape: bf16[1024,128], index: 1, kind: input, shape index: {}]
  %s2 = inlined_call_operand.vmem [shape: f32[1,128], index: 2, kind: input, shape index: {}]
  %s3 = inlined_call_operand.vmem [shape: f32[128,128], index: 3, kind: input, shape index: {}]
  %s4 = inlined_call_operand.vmem [shape: f32[1,128], index: 4, kind: input, shape index: {}]
  %s5 = inlined_call_operand.vmem [shape: f32[16,128], index: 5, kind: output, shape index: {}]
  %s6 = sld [smem:[#allocation0]]
  $region34: #{_lambda_.1} parent=0
    _
  %s8 = ssub.s32 1, %s6
  %s9 = scalar_select 0, %s8, %s6
  $region1: #{_lambda_.1} parent=0
    #allocation2 [shape = 'u8[262144]{0}', space=vmem, size = 0x40000, scoped, tag = 'input window, operand 1, single buffered']
    #allocation3 [shape = 's32[1]{0}', space=sflag, size = 0x4, scoped, tag = 'scoped memory for _lambda_.1']
    %10 = vsyncpa [#allocation3], 0
    // Predicated region
    $region2: #{_lambda_.1} parent=1 // pred_check
      _
    $region3: #{_lambda_.1} parent=1 // pred_check_branch
      %12 = sbr.rel (0) target = $region5
    $region4: #{_lambda_.1} parent=1 // pred_region
      _
    $region5: #{_lambda_.1} parent=1 // pred_fallthru
      _
    // Predicated region
    $region6: #{_lambda_.1} parent=1 // pred_check
      _
    $region7: #{_lambda_.1} parent=1 // pred_check_branch
      %14 = sbr.rel (0) target = $region9
    $region8: #{_lambda_.1} parent=1 // pred_region
      %s16 = ssub.s32 8192, 8192
      %17 = vsyncadd [#allocation3], %s16
      %s18 = sshll.u32 [#allocation2], 4
      %s19 = int_to_ptr.vmem [resolvable:$true] %s18
      %24 = dma.hbm_to_vmem [thread:$0]  %s1, 8192, %s19, [#allocation3], 64, 64, 4
    $region9: #{_lambda_.1} parent=1 // pred_fallthru
      _
    // Predicated region
    $region10: #{_lambda_.1} parent=1 // pred_check
      _
    $region11: #{_lambda_.1} parent=1 // pred_check_branch
      %26 = sbr.rel (0) target = $region13
    $region12: #{_lambda_.1} parent=1 // pred_region
      _
    $region13: #{_lambda_.1} parent=1 // pred_fallthru
      _
    // Predicated region
    $region14: #{_lambda_.1} parent=1 // pred_check
      _
    $region15: #{_lambda_.1} parent=1 // pred_check_branch
      %28 = sbr.rel (0) target = $region17
    $region16: #{_lambda_.1} parent=1 // pred_region
      _
    $region17: #{_lambda_.1} parent=1 // pred_fallthru
      _
    // Predicated region
    $region18: #{_lambda_.1} parent=1 // pred_check
      _
    $region19: #{_lambda_.1} parent=1 // pred_check_branch
      %30 = sbr.rel (0) target = $region21
    $region20: #{_lambda_.1} parent=1 // pred_region
      _
    $region21: #{_lambda_.1} parent=1 // pred_fallthru
      _
    // Predicated region
    $region22: #{_lambda_.1} parent=1 // pred_check
      _
    $region23: #{_lambda_.1} parent=1 // pred_check_branch
      %32 = sbr.rel (0) target = $region25
    $region24: #{_lambda_.1} parent=1 // pred_region
      %33 = dma.done [#allocation3], 8192
    $region25: #{_lambda_.1} parent=1 // pred_fallthru
      _
    %v35 = vld [vmem:[%s0] sm:$0xff]
    %v36 = vld [vmem:[%s0 + $0x8] sm:$0xff]
    %v37 = vld [vmem:[%s0 + $0x10] sm:$0xff]
    %v38 = vld [vmem:[%s0 + $0x18] sm:$0xff]
    %v39 = vld [vmem:[%s0 + $0x20] sm:$0xff]
    %v40 = vld [vmem:[%s0 + $0x28] sm:$0xff]
    %v41 = vld [vmem:[%s0 + $0x30] sm:$0xff]
    %v42 = vld [vmem:[%s0 + $0x38] sm:$0xff]
    %v43 = vld [vmem:[#allocation2] sm:$0xf]
    %v44 = vld [vmem:[#allocation2 + $0x4] sm:$0xf]
    %v45 = vld [vmem:[#allocation2 + $0x8] sm:$0xf]
    %v46 = vld [vmem:[#allocation2 + $0xc] sm:$0xf]
    %v47 = vld [vmem:[#allocation2 + $0x10] sm:$0xf]
    %v48 = vld [vmem:[#allocation2 + $0x14] sm:$0xf]
    %v49 = vld [vmem:[#allocation2 + $0x18] sm:$0xf]
    %v50 = vld [vmem:[#allocation2 + $0x1c] sm:$0xf]
    %v51 = vld [vmem:[#allocation2 + $0x20] sm:$0xf]
    %v52 = vld [vmem:[#allocation2 + $0x24] sm:$0xf]
    %v53 = vld [vmem:[#allocation2 + $0x28] sm:$0xf]
    %v54 = vld [vmem:[#allocation2 + $0x2c] sm:$0xf]
    %v55 = vld [vmem:[#allocation2 + $0x30] sm:$0xf]
    %v56 = vld [vmem:[#allocation2 + $0x34] sm:$0xf]
    %v57 = vld [vmem:[#allocation2 + $0x38] sm:$0xf]
    %v58 = vld [vmem:[#allocation2 + $0x3c] sm:$0xf]
    %v59 = vld [vmem:[#allocation2 + $0x40] sm:$0xf]
    %v60 = vld [vmem:[#allocation2 + $0x44] sm:$0xf]
    %v61 = vld [vmem:[#allocation2 + $0x48] sm:$0xf]
    %v62 = vld [vmem:[#allocation2 + $0x4c] sm:$0xf]
    %v63 = vld [vmem:[#allocation2 + $0x50] sm:$0xf]
    %v64 = vld [vmem:[#allocation2 + $0x54] sm:$0xf]
    %v65 = vld [vmem:[#allocation2 + $0x58] sm:$0xf]
    %v66 = vld [vmem:[#allocation2 + $0x5c] sm:$0xf]
    %v67 = vld [vmem:[#allocation2 + $0x60] sm:$0xf]
    %v68 = vld [vmem:[#allocation2 + $0x64] sm:$0xf]
    %v69 = vld [vmem:[#allocation2 + $0x68] sm:$0xf]
    %v70 = vld [vmem:[#allocation2 + $0x6c] sm:$0xf]
    %v71 = vld [vmem:[#allocation2 + $0x70] sm:$0xf]
    %v72 = vld [vmem:[#allocation2 + $0x74] sm:$0xf]
    %v73 = vld [vmem:[#allocation2 + $0x78] sm:$0xf]
    %v74 = vld [vmem:[#allocation2 + $0x7c] sm:$0xf]
    %v75 = vld [vmem:[#allocation2 + $0x80] sm:$0xf]
    %v76 = vld [vmem:[#allocation2 + $0x84] sm:$0xf]
    %v77 = vld [vmem:[#allocation2 + $0x88] sm:$0xf]
    %v78 = vld [vmem:[#allocation2 + $0x8c] sm:$0xf]
    %v79 = vld [vmem:[#allocation2 + $0x90] sm:$0xf]
    %v80 = vld [vmem:[#allocation2 + $0x94] sm:$0xf]
    %v81 = vld [vmem:[#allocation2 + $0x98] sm:$0xf]
    %v82 = vld [vmem:[#allocation2 + $0x9c] sm:$0xf]
    %v83 = vld [vmem:[#allocation2 + $0xa0] sm:$0xf]
    %v84 = vld [vmem:[#allocation2 + $0xa4] sm:$0xf]
    %v85 = vld [vmem:[#allocation2 + $0xa8] sm:$0xf]
    %v86 = vld [vmem:[#allocation2 + $0xac] sm:$0xf]
    %v87 = vld [vmem:[#allocation2 + $0xb0] sm:$0xf]
    %v88 = vld [vmem:[#allocation2 + $0xb4] sm:$0xf]
    %v89 = vld [vmem:[#allocation2 + $0xb8] sm:$0xf]
    %v90 = vld [vmem:[#allocation2 + $0xbc] sm:$0xf]
    %v91 = vld [vmem:[#allocation2 + $0xc0] sm:$0xf]
    %v92 = vld [vmem:[#allocation2 + $0xc4] sm:$0xf]
    %v93 = vld [vmem:[#allocation2 + $0xc8] sm:$0xf]
    %v94 = vld [vmem:[#allocation2 + $0xcc] sm:$0xf]
    %v95 = vld [vmem:[#allocation2 + $0xd0] sm:$0xf]
    %v96 = vld [vmem:[#allocation2 + $0xd4] sm:$0xf]
    %v97 = vld [vmem:[#allocation2 + $0xd8] sm:$0xf]
    %v98 = vld [vmem:[#allocation2 + $0xdc] sm:$0xf]
    %v99 = vld [vmem:[#allocation2 + $0xe0] sm:$0xf]
    %v100 = vld [vmem:[#allocation2 + $0xe4] sm:$0xf]
    %v101 = vld [vmem:[#allocation2 + $0xe8] sm:$0xf]
    %v102 = vld [vmem:[#allocation2 + $0xec] sm:$0xf]
    %v103 = vld [vmem:[#allocation2 + $0xf0] sm:$0xf]
    %v104 = vld [vmem:[#allocation2 + $0xf4] sm:$0xf]
    %v105 = vld [vmem:[#allocation2 + $0xf8] sm:$0xf]
    %v106 = vld [vmem:[#allocation2 + $0xfc] sm:$0xf]
    %v107 = vld [vmem:[#allocation2 + $0x100] sm:$0xf]
    %v108 = vld [vmem:[#allocation2 + $0x104] sm:$0xf]
    %v109 = vld [vmem:[#allocation2 + $0x108] sm:$0xf]
    %v110 = vld [vmem:[#allocation2 + $0x10c] sm:$0xf]
    %v111 = vld [vmem:[#allocation2 + $0x110] sm:$0xf]
    %v112 = vld [vmem:[#allocation2 + $0x114] sm:$0xf]
    %v113 = vld [vmem:[#allocation2 + $0x118] sm:$0xf]
    %v114 = vld [vmem:[#allocation2 + $0x11c] sm:$0xf]
    %v115 = vld [vmem:[#allocation2 + $0x120] sm:$0xf]
    %v116 = vld [vmem:[#allocation2 + $0x124] sm:$0xf]
    %v117 = vld [vmem:[#allocation2 + $0x128] sm:$0xf]
    %v118 = vld [vmem:[#allocation2 + $0x12c] sm:$0xf]
    %v119 = vld [vmem:[#allocation2 + $0x130] sm:$0xf]
    %v120 = vld [vmem:[#allocation2 + $0x134] sm:$0xf]
    %v121 = vld [vmem:[#allocation2 + $0x138] sm:$0xf]
    %v122 = vld [vmem:[#allocation2 + $0x13c] sm:$0xf]
    %v123 = vld [vmem:[#allocation2 + $0x140] sm:$0xf]
    %v124 = vld [vmem:[#allocation2 + $0x144] sm:$0xf]
    %v125 = vld [vmem:[#allocation2 + $0x148] sm:$0xf]
    %v126 = vld [vmem:[#allocation2 + $0x14c] sm:$0xf]
    %v127 = vld [vmem:[#allocation2 + $0x150] sm:$0xf]
    %v128 = vld [vmem:[#allocation2 + $0x154] sm:$0xf]
    %v129 = vld [vmem:[#allocation2 + $0x158] sm:$0xf]
    %v130 = vld [vmem:[#allocation2 + $0x15c] sm:$0xf]
    %v131 = vld [vmem:[#allocation2 + $0x160] sm:$0xf]
    %v132 = vld [vmem:[#allocation2 + $0x164] sm:$0xf]
    %v133 = vld [vmem:[#allocation2 + $0x168] sm:$0xf]
    %v134 = vld [vmem:[#allocation2 + $0x16c] sm:$0xf]
    %v135 = vld [vmem:[#allocation2 + $0x170] sm:$0xf]
    %v136 = vld [vmem:[#allocation2 + $0x174] sm:$0xf]
    %v137 = vld [vmem:[#allocation2 + $0x178] sm:$0xf]
    %v138 = vld [vmem:[#allocation2 + $0x17c] sm:$0xf]
    %v139 = vld [vmem:[#allocation2 + $0x180] sm:$0xf]
    %v140 = vld [vmem:[#allocation2 + $0x184] sm:$0xf]
    %v141 = vld [vmem:[#allocation2 + $0x188] sm:$0xf]
    %v142 = vld [vmem:[#allocation2 + $0x18c] sm:$0xf]
    %v143 = vld [vmem:[#allocation2 + $0x190] sm:$0xf]
    %v144 = vld [vmem:[#allocation2 + $0x194] sm:$0xf]
    %v145 = vld [vmem:[#allocation2 + $0x198] sm:$0xf]
    %v146 = vld [vmem:[#allocation2 + $0x19c] sm:$0xf]
    %v147 = vld [vmem:[#allocation2 + $0x1a0] sm:$0xf]
    %v148 = vld [vmem:[#allocation2 + $0x1a4] sm:$0xf]
    %v149 = vld [vmem:[#allocation2 + $0x1a8] sm:$0xf]
    %v150 = vld [vmem:[#allocation2 + $0x1ac] sm:$0xf]
    %v151 = vld [vmem:[#allocation2 + $0x1b0] sm:$0xf]
    %v152 = vld [vmem:[#allocation2 + $0x1b4] sm:$0xf]
    %v153 = vld [vmem:[#allocation2 + $0x1b8] sm:$0xf]
    %v154 = vld [vmem:[#allocation2 + $0x1bc] sm:$0xf]
    %v155 = vld [vmem:[#allocation2 + $0x1c0] sm:$0xf]
    %v156 = vld [vmem:[#allocation2 + $0x1c4] sm:$0xf]
    %v157 = vld [vmem:[#allocation2 + $0x1c8] sm:$0xf]
    %v158 = vld [vmem:[#allocation2 + $0x1cc] sm:$0xf]
    %v159 = vld [vmem:[#allocation2 + $0x1d0] sm:$0xf]
    %v160 = vld [vmem:[#allocation2 + $0x1d4] sm:$0xf]
    %v161 = vld [vmem:[#allocation2 + $0x1d8] sm:$0xf]
    %v162 = vld [vmem:[#allocation2 + $0x1dc] sm:$0xf]
    %v163 = vld [vmem:[#allocation2 + $0x1e0] sm:$0xf]
    %v164 = vld [vmem:[#allocation2 + $0x1e4] sm:$0xf]
    %v165 = vld [vmem:[#allocation2 + $0x1e8] sm:$0xf]
    %v166 = vld [vmem:[#allocation2 + $0x1ec] sm:$0xf]
    %v167 = vld [vmem:[#allocation2 + $0x1f0] sm:$0xf]
    %v168 = vld [vmem:[#allocation2 + $0x1f4] sm:$0xf]
    %v169 = vld [vmem:[#allocation2 + $0x1f8] sm:$0xf]
    %v170 = vld [vmem:[#allocation2 + $0x1fc] sm:$0xf]
    %v171 = vld [vmem:[%s2] sm:$0x1]
    %v173 = vlaneseq
    %v174 = vshrl.u32 %v173, 7
    %v175 = vsub.s32 0, %v174
    %v176 = vrot.slane %v171, %v175
    %v186 = vunpack.c.l.b16 %v35
    %v187 = vunpack.c.h.b16 %v35
    %v188 = vunpack.c.l.b16 %v36
    %v189 = vunpack.c.h.b16 %v36
    %v190 = vunpack.c.l.b16 %v37
    %v191 = vunpack.c.h.b16 %v37
    %v192 = vunpack.c.l.b16 %v38
    %v193 = vunpack.c.h.b16 %v38
    %v194 = vunpack.c.l.b16 %v39
    %v195 = vunpack.c.h.b16 %v39
    %v196 = vunpack.c.l.b16 %v40
    %v197 = vunpack.c.h.b16 %v40
    %v198 = vunpack.c.l.b16 %v41
    %v199 = vunpack.c.h.b16 %v41
    %v200 = vunpack.c.l.b16 %v42
    %v201 = vunpack.c.h.b16 %v42
    %v202 = vpack.c.b16 %v194, %v186
    %v203 = vpack.c.b16 %v195, %v187
    %v204 = vpack.c.b16 %v196, %v188
    %v205 = vpack.c.b16 %v197, %v189
    %v206 = vpack.c.b16 %v198, %v190
    %v207 = vpack.c.b16 %v199, %v191
    %v208 = vpack.c.b16 %v200, %v192
    %v209 = vpack.c.b16 %v201, %v193
    %v346 = vunpack.c.l.b16 %v43
    %v347 = vunpack.c.l.b16 %v44
    %v348 = vunpack.c.l.b16 %v45
    %v349 = vunpack.c.l.b16 %v46
    %v350 = vunpack.c.l.b16 %v47
    %v351 = vunpack.c.l.b16 %v48
    %v352 = vunpack.c.l.b16 %v49
    %v353 = vunpack.c.l.b16 %v50
    %v354 = vunpack.c.l.b16 %v51
    %v355 = vunpack.c.l.b16 %v52
    %v356 = vunpack.c.l.b16 %v53
    %v357 = vunpack.c.l.b16 %v54
    %v358 = vunpack.c.l.b16 %v55
    %v359 = vunpack.c.l.b16 %v56
    %v360 = vunpack.c.l.b16 %v57
    %v361 = vunpack.c.l.b16 %v58
    %v362 = vunpack.c.l.b16 %v59
    %v363 = vunpack.c.l.b16 %v60
    %v364 = vunpack.c.l.b16 %v61
    %v365 = vunpack.c.l.b16 %v62
    %v366 = vunpack.c.l.b16 %v63
    %v367 = vunpack.c.l.b16 %v64
    %v368 = vunpack.c.l.b16 %v65
    %v369 = vunpack.c.l.b16 %v66
    %v370 = vunpack.c.l.b16 %v67
    %v371 = vunpack.c.l.b16 %v68
    %v372 = vunpack.c.l.b16 %v69
    %v373 = vunpack.c.l.b16 %v70
    %v374 = vunpack.c.l.b16 %v71
    %v375 = vunpack.c.l.b16 %v72
    %v376 = vunpack.c.l.b16 %v73
    %v377 = vunpack.c.l.b16 %v74
    %v378 = vunpack.c.l.b16 %v75
    %v379 = vunpack.c.l.b16 %v76
    %v380 = vunpack.c.l.b16 %v77
    %v381 = vunpack.c.l.b16 %v78
    %v382 = vunpack.c.l.b16 %v79
    %v383 = vunpack.c.l.b16 %v80
    %v384 = vunpack.c.l.b16 %v81
    %v385 = vunpack.c.l.b16 %v82
    %v386 = vunpack.c.l.b16 %v83
    %v387 = vunpack.c.l.b16 %v84
    %v388 = vunpack.c.l.b16 %v85
    %v389 = vunpack.c.l.b16 %v86
    %v390 = vunpack.c.l.b16 %v87
    %v391 = vunpack.c.l.b16 %v88
    %v392 = vunpack.c.l.b16 %v89
    %v393 = vunpack.c.l.b16 %v90
    %v394 = vunpack.c.l.b16 %v91
    %v395 = vunpack.c.l.b16 %v92
    %v396 = vunpack.c.l.b16 %v93
    %v397 = vunpack.c.l.b16 %v94
    %v398 = vunpack.c.l.b16 %v95
    %v399 = vunpack.c.l.b16 %v96
    %v400 = vunpack.c.l.b16 %v97
    %v401 = vunpack.c.l.b16 %v98
    %v402 = vunpack.c.l.b16 %v99
    %v403 = vunpack.c.l.b16 %v100
    %v404 = vunpack.c.l.b16 %v101
    %v405 = vunpack.c.l.b16 %v102
    %v406 = vunpack.c.l.b16 %v103
    %v407 = vunpack.c.l.b16 %v104
    %v408 = vunpack.c.l.b16 %v105
    %v409 = vunpack.c.l.b16 %v106
    %v410 = vunpack.c.l.b16 %v107
    %v411 = vunpack.c.l.b16 %v108
    %v412 = vunpack.c.l.b16 %v109
    %v413 = vunpack.c.l.b16 %v110
    %v414 = vunpack.c.l.b16 %v111
    %v415 = vunpack.c.l.b16 %v112
    %v416 = vunpack.c.l.b16 %v113
    %v417 = vunpack.c.l.b16 %v114
    %v418 = vunpack.c.l.b16 %v115
    %v419 = vunpack.c.l.b16 %v116
    %v420 = vunpack.c.l.b16 %v117
    %v421 = vunpack.c.l.b16 %v118
    %v422 = vunpack.c.l.b16 %v119
    %v423 = vunpack.c.l.b16 %v120
    %v424 = vunpack.c.l.b16 %v121
    %v425 = vunpack.c.l.b16 %v122
    %v426 = vunpack.c.l.b16 %v123
    %v427 = vunpack.c.l.b16 %v124
    %v428 = vunpack.c.l.b16 %v125
    %v429 = vunpack.c.l.b16 %v126
    %v430 = vunpack.c.l.b16 %v127
    %v431 = vunpack.c.l.b16 %v128
    %v432 = vunpack.c.l.b16 %v129
    %v433 = vunpack.c.l.b16 %v130
    %v434 = vunpack.c.l.b16 %v131
    %v435 = vunpack.c.l.b16 %v132
    %v436 = vunpack.c.l.b16 %v133
    %v437 = vunpack.c.l.b16 %v134
    %v438 = vunpack.c.l.b16 %v135
    %v439 = vunpack.c.l.b16 %v136
    %v440 = vunpack.c.l.b16 %v137
    %v441 = vunpack.c.l.b16 %v138
    %v442 = vunpack.c.l.b16 %v139
    %v443 = vunpack.c.l.b16 %v140
    %v444 = vunpack.c.l.b16 %v141
    %v445 = vunpack.c.l.b16 %v142
    %v446 = vunpack.c.l.b16 %v143
    %v447 = vunpack.c.l.b16 %v144
    %v448 = vunpack.c.l.b16 %v145
    %v449 = vunpack.c.l.b16 %v146
    %v450 = vunpack.c.l.b16 %v147
    %v451 = vunpack.c.l.b16 %v148
    %v452 = vunpack.c.l.b16 %v149
    %v453 = vunpack.c.l.b16 %v150
    %v454 = vunpack.c.l.b16 %v151
    %v455 = vunpack.c.l.b16 %v152
    %v456 = vunpack.c.l.b16 %v153
    %v457 = vunpack.c.l.b16 %v154
    %v458 = vunpack.c.l.b16 %v155
    %v459 = vunpack.c.l.b16 %v156
    %v460 = vunpack.c.l.b16 %v157
    %v461 = vunpack.c.l.b16 %v158
    %v462 = vunpack.c.l.b16 %v159
    %v463 = vunpack.c.l.b16 %v160
    %v464 = vunpack.c.l.b16 %v161
    %v465 = vunpack.c.l.b16 %v162
    %v466 = vunpack.c.l.b16 %v163
    %v467 = vunpack.c.l.b16 %v164
    %v468 = vunpack.c.l.b16 %v165
    %v469 = vunpack.c.l.b16 %v166
    %v470 = vunpack.c.l.b16 %v167
    %v471 = vunpack.c.l.b16 %v168
    %v472 = vunpack.c.l.b16 %v169
    %v473 = vunpack.c.l.b16 %v170
    %v474 = vpack.c.b16 %v347, %v346
    %v475 = vpack.c.b16 %v349, %v348
    %v476 = vpack.c.b16 %v351, %v350
    %v477 = vpack.c.b16 %v353, %v352
    %v478 = vpack.c.b16 %v355, %v354
    %v479 = vpack.c.b16 %v357, %v356
    %v480 = vpack.c.b16 %v359, %v358
    %v481 = vpack.c.b16 %v361, %v360
    %v482 = vpack.c.b16 %v363, %v362
    %v483 = vpack.c.b16 %v365, %v364
    %v484 = vpack.c.b16 %v367, %v366
    %v485 = vpack.c.b16 %v369, %v368
    %v486 = vpack.c.b16 %v371, %v370
    %v487 = vpack.c.b16 %v373, %v372
    %v488 = vpack.c.b16 %v375, %v374
    %v489 = vpack.c.b16 %v377, %v376
    %v490 = vpack.c.b16 %v379, %v378
    %v491 = vpack.c.b16 %v381, %v380
    %v492 = vpack.c.b16 %v383, %v382
    %v493 = vpack.c.b16 %v385, %v384
    %v494 = vpack.c.b16 %v387, %v386
    %v495 = vpack.c.b16 %v389, %v388
    %v496 = vpack.c.b16 %v391, %v390
    %v497 = vpack.c.b16 %v393, %v392
    %v498 = vpack.c.b16 %v395, %v394
    %v499 = vpack.c.b16 %v397, %v396
    %v500 = vpack.c.b16 %v399, %v398
    %v501 = vpack.c.b16 %v401, %v400
    %v502 = vpack.c.b16 %v403, %v402
    %v503 = vpack.c.b16 %v405, %v404
    %v504 = vpack.c.b16 %v407, %v406
    %v505 = vpack.c.b16 %v409, %v408
    %v506 = vpack.c.b16 %v411, %v410
    %v507 = vpack.c.b16 %v413, %v412
    %v508 = vpack.c.b16 %v415, %v414
    %v509 = vpack.c.b16 %v417, %v416
    %v510 = vpack.c.b16 %v419, %v418
    %v511 = vpack.c.b16 %v421, %v420
    %v512 = vpack.c.b16 %v423, %v422
    %v513 = vpack.c.b16 %v425, %v424
    %v514 = vpack.c.b16 %v427, %v426
    %v515 = vpack.c.b16 %v429, %v428
    %v516 = vpack.c.b16 %v431, %v430
    %v517 = vpack.c.b16 %v433, %v432
    %v518 = vpack.c.b16 %v435, %v434
    %v519 = vpack.c.b16 %v437, %v436
    %v520 = vpack.c.b16 %v439, %v438
    %v521 = vpack.c.b16 %v441, %v440
    %v522 = vpack.c.b16 %v443, %v442
    %v523 = vpack.c.b16 %v445, %v444
    %v524 = vpack.c.b16 %v447, %v446
    %v525 = vpack.c.b16 %v449, %v448
    %v526 = vpack.c.b16 %v451, %v450
    %v527 = vpack.c.b16 %v453, %v452
    %v528 = vpack.c.b16 %v455, %v454
    %v529 = vpack.c.b16 %v457, %v456
    %v530 = vpack.c.b16 %v459, %v458
    %v531 = vpack.c.b16 %v461, %v460
    %v532 = vpack.c.b16 %v463, %v462
    %v533 = vpack.c.b16 %v465, %v464
    %v534 = vpack.c.b16 %v467, %v466
    %v535 = vpack.c.b16 %v469, %v468
    %v536 = vpack.c.b16 %v471, %v470
    %v537 = vpack.c.b16 %v473, %v472
    %602 = vmatprep.subr.bf16.mxu0 0
    %603 = vmatpush1.bf16.msra.mxu0 %v481
    %604 = vmatprep.subr.bf16.mxu0 0
    %605 = vmatpush1.bf16.msra.mxu0 %v480
    %606 = vmatprep.subr.bf16.mxu0 0
    %607 = vmatpush1.bf16.msra.mxu0 %v479
    %608 = vmatprep.subr.bf16.mxu0 0
    %609 = vmatpush1.bf16.msra.mxu0 %v478
    %610 = vmatprep.subr.bf16.mxu0 0
    %611 = vmatpush1.bf16.msra.mxu0 %v477
    %612 = vmatprep.subr.bf16.mxu0 0
    %613 = vmatpush1.bf16.msra.mxu0 %v476
    %614 = vmatprep.subr.bf16.mxu0 0
    %615 = vmatpush1.bf16.msra.mxu0 %v475
    %616 = vmatprep.subr.bf16.mxu0 0
    %617 = vmatpush1.bf16.msra.mxu0 %v474
    %618 = vmatprep.subr.bf16.mxu0 0
    %619 = vmatpush2.bf16.msra.mxu0 %v489
    %620 = vmatprep.subr.bf16.mxu0 0
    %621 = vmatpush2.bf16.msra.mxu0 %v488
    %622 = vmatprep.subr.bf16.mxu0 0
    %623 = vmatpush2.bf16.msra.mxu0 %v487
    %624 = vmatprep.subr.bf16.mxu0 0
    %625 = vmatpush2.bf16.msra.mxu0 %v486
    %626 = vmatprep.subr.bf16.mxu0 0
    %627 = vmatpush2.bf16.msra.mxu0 %v485
    %628 = vmatprep.subr.bf16.mxu0 0
    %629 = vmatpush2.bf16.msra.mxu0 %v484
    %630 = vmatprep.subr.bf16.mxu0 0
    %631 = vmatpush2.bf16.msra.mxu0 %v483
    %632 = vmatprep.subr.bf16.mxu0 0
    %633 = vmatpush2.bf16.msra.mxu0 %v482
    %634 = vmatprep.mubr.bf16.mxu0 %v203
    %635 = vmatmul.mubr.bf16.gmra.mxu0 %v202
    %v636 = vpop.f32.mrf.mxu0
    %v637 = vadd.f32 %v176, %v636
    %v638 = vpop.f32.mrf.mxu0
    %v639 = vpop.f32.mrf.mxu0
    %v640 = vadd.f32 %v176, %v639
    %v641 = vpop.f32.mrf.mxu0
    %642 = vdwg.mxu0
    %643 = vmatprep.subr.bf16.mxu0 0
    %644 = vmatpush1.bf16.msra.mxu0 %v497
    %645 = vmatprep.subr.bf16.mxu0 0
    %646 = vmatpush1.bf16.msra.mxu0 %v496
    %647 = vmatprep.subr.bf16.mxu0 0
    %648 = vmatpush1.bf16.msra.mxu0 %v495
    %649 = vmatprep.subr.bf16.mxu0 0
    %650 = vmatpush1.bf16.msra.mxu0 %v494
    %651 = vmatprep.subr.bf16.mxu0 0
    %652 = vmatpush1.bf16.msra.mxu0 %v493
    %653 = vmatprep.subr.bf16.mxu0 0
    %654 = vmatpush1.bf16.msra.mxu0 %v492
    %655 = vmatprep.subr.bf16.mxu0 0
    %656 = vmatpush1.bf16.msra.mxu0 %v491
    %657 = vmatprep.subr.bf16.mxu0 0
    %658 = vmatpush1.bf16.msra.mxu0 %v490
    %659 = vmatprep.subr.bf16.mxu0 0
    %660 = vmatpush2.bf16.msra.mxu0 %v505
    %661 = vmatprep.subr.bf16.mxu0 0
    %662 = vmatpush2.bf16.msra.mxu0 %v504
    %663 = vmatprep.subr.bf16.mxu0 0
    %664 = vmatpush2.bf16.msra.mxu0 %v503
    %665 = vmatprep.subr.bf16.mxu0 0
    %666 = vmatpush2.bf16.msra.mxu0 %v502
    %667 = vmatprep.subr.bf16.mxu0 0
    %668 = vmatpush2.bf16.msra.mxu0 %v501
    %669 = vmatprep.subr.bf16.mxu0 0
    %670 = vmatpush2.bf16.msra.mxu0 %v500
    %671 = vmatprep.subr.bf16.mxu0 0
    %672 = vmatpush2.bf16.msra.mxu0 %v499
    %673 = vmatprep.subr.bf16.mxu0 0
    %674 = vmatpush2.bf16.msra.mxu0 %v498
    %675 = vmatprep.mubr.bf16.mxu0 %v205
    %676 = vmatmul.mubr.bf16.gmra.mxu0 %v204
    %v677 = vpop.f32.mrf.mxu0
    %v678 = vadd.f32 %v637, %v677
    %v679 = vpop.f32.mrf.mxu0
    %v680 = vpop.f32.mrf.mxu0
    %v681 = vadd.f32 %v640, %v680
    %v682 = vpop.f32.mrf.mxu0
    %683 = vdwg.mxu0
    %684 = vmatprep.subr.bf16.mxu0 0
    %685 = vmatpush1.bf16.msra.mxu0 %v513
    %686 = vmatprep.subr.bf16.mxu0 0
    %687 = vmatpush1.bf16.msra.mxu0 %v512
    %688 = vmatprep.subr.bf16.mxu0 0
    %689 = vmatpush1.bf16.msra.mxu0 %v511
    %690 = vmatprep.subr.bf16.mxu0 0
    %691 = vmatpush1.bf16.msra.mxu0 %v510
    %692 = vmatprep.subr.bf16.mxu0 0
    %693 = vmatpush1.bf16.msra.mxu0 %v509
    %694 = vmatprep.subr.bf16.mxu0 0
    %695 = vmatpush1.bf16.msra.mxu0 %v508
    %696 = vmatprep.subr.bf16.mxu0 0
    %697 = vmatpush1.bf16.msra.mxu0 %v507
    %698 = vmatprep.subr.bf16.mxu0 0
    %699 = vmatpush1.bf16.msra.mxu0 %v506
    %700 = vmatprep.subr.bf16.mxu0 0
    %701 = vmatpush2.bf16.msra.mxu0 %v521
    %702 = vmatprep.subr.bf16.mxu0 0
    %703 = vmatpush2.bf16.msra.mxu0 %v520
    %704 = vmatprep.subr.bf16.mxu0 0
    %705 = vmatpush2.bf16.msra.mxu0 %v519
    %706 = vmatprep.subr.bf16.mxu0 0
    %707 = vmatpush2.bf16.msra.mxu0 %v518
    %708 = vmatprep.subr.bf16.mxu0 0
    %709 = vmatpush2.bf16.msra.mxu0 %v517
    %710 = vmatprep.subr.bf16.mxu0 0
    %711 = vmatpush2.bf16.msra.mxu0 %v516
    %712 = vmatprep.subr.bf16.mxu0 0
    %713 = vmatpush2.bf16.msra.mxu0 %v515
    %714 = vmatprep.subr.bf16.mxu0 0
    %715 = vmatpush2.bf16.msra.mxu0 %v514
    %716 = vmatprep.mubr.bf16.mxu0 %v207
    %717 = vmatmul.mubr.bf16.gmra.mxu0 %v206
    %v718 = vpop.f32.mrf.mxu0
    %v719 = vadd.f32 %v678, %v718
    %v720 = vpop.f32.mrf.mxu0
    %v721 = vpop.f32.mrf.mxu0
    %v722 = vadd.f32 %v681, %v721
    %v723 = vpop.f32.mrf.mxu0
    %724 = vdwg.mxu0
    %725 = vmatprep.subr.bf16.mxu0 0
    %726 = vmatpush1.bf16.msra.mxu0 %v529
    %727 = vmatprep.subr.bf16.mxu0 0
    %728 = vmatpush1.bf16.msra.mxu0 %v528
    %729 = vmatprep.subr.bf16.mxu0 0
    %730 = vmatpush1.bf16.msra.mxu0 %v527
    %731 = vmatprep.subr.bf16.mxu0 0
    %732 = vmatpush1.bf16.msra.mxu0 %v526
    %733 = vmatprep.subr.bf16.mxu0 0
    %734 = vmatpush1.bf16.msra.mxu0 %v525
    %735 = vmatprep.subr.bf16.mxu0 0
    %736 = vmatpush1.bf16.msra.mxu0 %v524
    %737 = vmatprep.subr.bf16.mxu0 0
    %738 = vmatpush1.bf16.msra.mxu0 %v523
    %739 = vmatprep.subr.bf16.mxu0 0
    %740 = vmatpush1.bf16.msra.mxu0 %v522
    %741 = vmatprep.subr.bf16.mxu0 0
    %742 = vmatpush2.bf16.msra.mxu0 %v537
    %743 = vmatprep.subr.bf16.mxu0 0
    %744 = vmatpush2.bf16.msra.mxu0 %v536
    %745 = vmatprep.subr.bf16.mxu0 0
    %746 = vmatpush2.bf16.msra.mxu0 %v535
    %747 = vmatprep.subr.bf16.mxu0 0
    %748 = vmatpush2.bf16.msra.mxu0 %v534
    %749 = vmatprep.subr.bf16.mxu0 0
    %750 = vmatpush2.bf16.msra.mxu0 %v533
    %751 = vmatprep.subr.bf16.mxu0 0
    %752 = vmatpush2.bf16.msra.mxu0 %v532
    %753 = vmatprep.subr.bf16.mxu0 0
    %754 = vmatpush2.bf16.msra.mxu0 %v531
    %755 = vmatprep.subr.bf16.mxu0 0
    %756 = vmatpush2.bf16.msra.mxu0 %v530
    %757 = vmatprep.mubr.bf16.mxu0 %v209
    %758 = vmatmul.mubr.bf16.gmra.mxu0 %v208
    %v759 = vpop.f32.mrf.mxu0
    %v760 = vadd.f32 %v719, %v759
    %v761 = vpop.f32.mrf.mxu0
    %v762 = vpop.f32.mrf.mxu0
    %v763 = vadd.f32 %v722, %v762
    %v764 = vpop.f32.mrf.mxu0
    %765 = vdwg.mxu0
    %v766 = vsub.f32 0.0, %v760
    %v767 = vsub.f32 0.0, %v763
    %v768 = vmul.f32 %v766, 1.442695
    %v769 = vpow.pop %v768
    %v770 = vmul.f32 %v767, 1.442695
    %v771 = vpow.pop %v770
    %v772 = vadd.f32 %v769, 1.0
    %v773 = vadd.f32 %v771, 1.0
    %v774 = vrcp.pop %v772
    %v775 = vrcp.pop %v773
    %v776 = vld [vmem:[%s3] sm:$0xff]
    %v777 = vld [vmem:[%s3 + $0x8] sm:$0xff]
    %v778 = vld [vmem:[%s3 + $0x10] sm:$0xff]
    %v779 = vld [vmem:[%s3 + $0x18] sm:$0xff]
    %v780 = vld [vmem:[%s3 + $0x20] sm:$0xff]
    %v781 = vld [vmem:[%s3 + $0x28] sm:$0xff]
    %v782 = vld [vmem:[%s3 + $0x30] sm:$0xff]
    %v783 = vld [vmem:[%s3 + $0x38] sm:$0xff]
    %v784 = vld [vmem:[%s3 + $0x40] sm:$0xff]
    %v785 = vld [vmem:[%s3 + $0x48] sm:$0xff]
    %v786 = vld [vmem:[%s3 + $0x50] sm:$0xff]
    %v787 = vld [vmem:[%s3 + $0x58] sm:$0xff]
    %v788 = vld [vmem:[%s3 + $0x60] sm:$0xff]
    %v789 = vld [vmem:[%s3 + $0x68] sm:$0xff]
    %v790 = vld [vmem:[%s3 + $0x70] sm:$0xff]
    %v791 = vld [vmem:[%s3 + $0x78] sm:$0xff]
    %v792 = vld [vmem:[%s4] sm:$0x1]
    %v794 = vlaneseq
    %v795 = vshrl.u32 %v794, 7
    %v796 = vsub.s32 0, %v795
    %v797 = vrot.slane %v792, %v796
    %799 = vmatprep.subr.mxu0 0.0
    %800 = vmatpush1.msra.mxu0 %v791
    %801 = vmatprep.subr.mxu0 0.0
    %802 = vmatpush1.msra.mxu0 %v790
    %803 = vmatprep.subr.mxu0 0.0
    %804 = vmatpush1.msra.mxu0 %v789
    %805 = vmatprep.subr.mxu0 0.0
    %806 = vmatpush1.msra.mxu0 %v788
    %807 = vmatprep.subr.mxu0 0.0
    %808 = vmatpush1.msra.mxu0 %v787
    %809 = vmatprep.subr.mxu0 0.0
    %810 = vmatpush1.msra.mxu0 %v786
    %811 = vmatprep.subr.mxu0 0.0
    %812 = vmatpush1.msra.mxu0 %v785
    %813 = vmatprep.subr.mxu0 0.0
    %814 = vmatpush1.msra.mxu0 %v784
    %815 = vmatprep.subr.mxu0 0.0
    %816 = vmatpush1.msra.mxu0 %v783
    %817 = vmatprep.subr.mxu0 0.0
    %818 = vmatpush1.msra.mxu0 %v782
    %819 = vmatprep.subr.mxu0 0.0
    %820 = vmatpush1.msra.mxu0 %v781
    %821 = vmatprep.subr.mxu0 0.0
    %822 = vmatpush1.msra.mxu0 %v780
    %823 = vmatprep.subr.mxu0 0.0
    %824 = vmatpush1.msra.mxu0 %v779
    %825 = vmatprep.subr.mxu0 0.0
    %826 = vmatpush1.msra.mxu0 %v778
    %827 = vmatprep.subr.mxu0 0.0
    %828 = vmatpush1.msra.mxu0 %v777
    %829 = vmatprep.subr.mxu0 0.0
    %830 = vmatpush1.msra.mxu0 %v776
    %831 = vmatprep.subr.mxu0 0.0
    %832 = vmatpush2.msra.mxu0 0.0
    %833 = vmatprep.subr.mxu0 0.0
    %834 = vmatpush2.msra.mxu0 0.0
    %835 = vmatprep.subr.mxu0 0.0
    %836 = vmatpush2.msra.mxu0 0.0
    %837 = vmatprep.subr.mxu0 0.0
    %838 = vmatpush2.msra.mxu0 0.0
    %839 = vmatprep.subr.mxu0 0.0
    %840 = vmatpush2.msra.mxu0 0.0
    %841 = vmatprep.subr.mxu0 0.0
    %842 = vmatpush2.msra.mxu0 0.0
    %843 = vmatprep.subr.mxu0 0.0
    %844 = vmatpush2.msra.mxu0 0.0
    %845 = vmatprep.subr.mxu0 0.0
    %846 = vmatpush2.msra.mxu0 0.0
    %847 = vmatprep.subr.mxu0 0.0
    %848 = vmatpush2.msra.mxu0 0.0
    %849 = vmatprep.subr.mxu0 0.0
    %850 = vmatpush2.msra.mxu0 0.0
    %851 = vmatprep.subr.mxu0 0.0
    %852 = vmatpush2.msra.mxu0 0.0
    %853 = vmatprep.subr.mxu0 0.0
    %854 = vmatpush2.msra.mxu0 0.0
    %855 = vmatprep.subr.mxu0 0.0
    %856 = vmatpush2.msra.mxu0 0.0
    %857 = vmatprep.subr.mxu0 0.0
    %858 = vmatpush2.msra.mxu0 0.0
    %859 = vmatprep.subr.mxu0 0.0
    %860 = vmatpush2.msra.mxu0 0.0
    %861 = vmatprep.subr.mxu0 0.0
    %862 = vmatpush2.msra.mxu0 0.0
    %863 = vmatprep.mubr.f32.mxu0 0.0
    %864 = vmatmul.mubr.f32.gmra.mxu0 %v774
    %v865 = vpop.f32.mrf.mxu0
    %v866 = vadd.f32 %v797, %v865
    %v867 = vpop.f32.mrf.mxu0
    %868 = vmatprep.mubr.f32.mxu0 0.0
    %869 = vmatmul.mubr.f32.gmra.mxu0 %v775
    %v870 = vpop.f32.mrf.mxu0
    %v871 = vadd.f32 %v797, %v870
    %v872 = vpop.f32.mrf.mxu0
    %873 = vdwg.mxu0
    %874 = vst [vmem:[%s5] sm:$0xff] %v866
    %875 = vst [vmem:[%s5 + $0x8] sm:$0xff] %v871
    // Predicated region
    $region26: #{_lambda_.1} parent=1 // pred_check
      _
    $region27: #{_lambda_.1} parent=1 // pred_check_branch
      %877 = sbr.rel (0) target = $region29
    $region28: #{_lambda_.1} parent=1 // pred_region
      _
    $region29: #{_lambda_.1} parent=1 // pred_fallthru
      _
    // Predicated region
    $region30: #{_lambda_.1} parent=1 // pred_check
      _
    $region31: #{_lambda_.1} parent=1 // pred_check_branch
      %879 = sbr.rel (0) target = $region33
    $region32: #{_lambda_.1} parent=1 // pred_region
      _
    $region33: #{_lambda_.1} parent=1 // pred_fallthru
      _
    %880 = vsyncpa [#allocation3], 1

</llo_original>
